<compile_context>
chip_gen: v7x
topology: tpu7x:2x2x1
jax: 0.10.0
libtpu: 0.0.40
codegen_flags: <defaults>
</compile_context>

<pallas_src>
import functools

import jax
import jax.numpy as jnp
from jax.experimental import pallas as pl
from jax.experimental.pallas import tpu as pltpu

_IGNORE_INDEX = -100      # PyTorch F.nll_loss default
_NUM_CORES = 2            # leading "parallel" axis: megacore split on v7x, serial loop elsewhere
_MAX_TILE_ROWS = 1024     # 4 slabs x 2 bufs x 1024x128x4B = 4 MiB of double-buffered VMEM
_STRIP_ROWS = 64          # fold each tile into the (8,128) accumulator in 64-row strips


def _round_up(x, m):
    return ((x + m - 1) // m) * m


# --------------------------- shared NLL helper (in-kernel) -------------------

def _nll_from_block(logp, tgt, *, reduction, ignore_index):
    """NLL over a fully-resident (N, C) f32 log-prob block; tgt is (N, 1) int32."""
    n, c = logp.shape
    cls = jax.lax.broadcasted_iota(jnp.int32, (n, c), 1)
    valid = tgt != ignore_index                                   # (N, 1)
    hit = jnp.logical_and(cls == tgt, valid)                      # (N, C)
    picked = jnp.sum(jnp.where(hit, logp, 0.0))                   # sum_i logp[i, tgt[i]]
    if reduction == "mean":
        # PyTorch: mean over non-ignored targets only.
        denom = jnp.maximum(jnp.sum(valid.astype(jnp.float32)), 1.0)
        return -picked / denom
    return -picked                                                # 'sum'


# --------------------------- NLL-only kernel (old_model is None) -------------

def _nll_only_kernel(logp_ref, tgt_ref, loss_ref, *, reduction, ignore_index):
    logp = logp_ref[...].astype(jnp.float32)
    loss_ref[0] = _nll_from_block(logp, tgt_ref[...],
                                  reduction=reduction, ignore_index=ignore_index)


def nll_loss_pallas(output, target, reduction="mean", ignore_index=_IGNORE_INDEX):
    # TODO(synk): reduction='none' (per-sample loss vector output) not implemented.
    # TODO(synk): large-C tiling of the (N, C) block (LM-sized vocab heads).
    assert reduction in ("mean", "sum")
    n, c = output.shape
    tgt2d = target.reshape(n, 1).astype(jnp.int32)
    kernel = functools.partial(_nll_only_kernel, reduction=reduction,
                               ignore_index=ignore_index)
    out = pl.pallas_call(
        kernel,
        out_shape=jax.ShapeDtypeStruct((1,), jnp.float32),
        in_specs=[pl.BlockSpec(memory_space=pltpu.MemorySpace.VMEM),
                  pl.BlockSpec(memory_space=pltpu.MemorySpace.VMEM)],
        out_specs=pl.BlockSpec(memory_space=pltpu.MemorySpace.SMEM),
    )(output, tgt2d)
    return out[0]


# --------------------------- fused NLL + KL kernel ----------------------------

def _fused_kernel(logp_ref, tgt_ref, mu_ref, lv_ref, mu_o_ref, lv_o_ref,
                  out_ref, acc_ref, *,
                  reduction, ignore_index, kl_scale,
                  kt, tile_rows, strip_rows, valid_rows, needs_mask):
    # Grid position is read ONLY at the kernel top level (program_id inside a
    # pl.when body is rejected by the interpret/lowering path).
    c = pl.program_id(0)
    k = pl.program_id(1)
    # Unclamped global first row of this tile (the DMA index_map is clamped
    # separately; rows >= valid_rows are masked out below).
    row0 = (c * kt + k) * tile_rows

    @pl.when(k == 0)
    def _init():
        acc_ref[...] = jnp.zeros_like(acc_ref)

    def strip_kl(off):
        sl = pl.ds(off, strip_rows)
        mu = mu_ref[sl, :].astype(jnp.float32)
        lv = lv_ref[sl, :].astype(jnp.float32)
        mu_o = mu_o_ref[sl, :].astype(jnp.float32)
        lv_o = lv_o_ref[sl, :].astype(jnp.float32)
        # KL(N(mu, e^lv) || N(mu_o, e^lv_o)) per weight, EUP-lean form
        # (x 1/2 applied once at finalize):
        t = lv_o - lv + jnp.exp(lv - lv_o) + (mu - mu_o) ** 2 * jnp.exp(-lv_o) - 1.0
        if needs_mask:
            # Rows beyond the valid slab (OOB / garbage) are select-masked to 0
            # AFTER the arithmetic, so NaN/Inf in garbage rows cannot leak.
            ridx = jax.lax.broadcasted_iota(jnp.int32, (strip_rows, 128), 0)
            t = jnp.where(ridx < (valid_rows - row0 - off), t, 0.0)
        if strip_rows > 8:
            t = jnp.sum(t.reshape(strip_rows // 8, 8, 128), axis=0)
        return t                                                   # (8, 128)

    partial = strip_kl(0)
    for s in range(1, tile_rows // strip_rows):                    # static unroll
        partial = partial + strip_kl(s * strip_rows)
    acc_ref[...] += partial

    @pl.when(k == kt - 1)
    def _finalize():
        kl_part = (0.5 * kl_scale) * acc_ref[...]                  # (8, 128) lane-dense
        out_ref[0] = kl_part

        # Only core 0 computes the NLL and folds it into element [0, 0] of its
        # output block, so a single pallas_call emits the whole loss.
        @pl.when(c == 0)
        def _fold_nll():
            logp = logp_ref[...].astype(jnp.float32)
            nll = _nll_from_block(logp, tgt_ref[...],
                                  reduction=reduction, ignore_index=ignore_index)
            sub = jax.lax.broadcasted_iota(jnp.int32, (8, 128), 0)
            lane = jax.lax.broadcasted_iota(jnp.int32, (8, 128), 1)
            mask = jnp.logical_and(sub == 0, lane == 0)
            out_ref[0] = kl_part + jnp.where(mask, nll, 0.0)


# ------------------------------ VCL loss wrapper ------------------------------

def vcl_loss(output, target, new_params=None, old_params=None, reduction="mean"):
    """Forward of VCL_loss.  new_params/old_params: (mu, log_var) arrays or None."""
    # TODO(synk): reduction='none' not implemented.
    # TODO(synk): multi-tensor model.KL_term (list of per-layer (mu, log_var))
    #             -- callers pass one flattened pair per model.
    assert reduction in ("mean", "sum")
    if old_params is None:
        return nll_loss_pallas(output, target, reduction)

    n, c = output.shape
    tgt2d = target.reshape(n, 1).astype(jnp.int32)
    normalizer = n if reduction == "mean" else 1
    kl_scale = 1.0 / float(normalizer)

    mu_new, lv_new = new_params
    mu_old, lv_old = old_params
    nelem = mu_new.size
    assert lv_new.size == nelem and mu_old.size == nelem and lv_old.size == nelem

    def to_rows(a):
        flat = jnp.ravel(a)                       # free for contiguous arrays
        if nelem % 128 != 0:
            # TODO(synk): non multiple-of-128 slabs still incur one pad copy;
            # zero padding contributes exactly 0 KL (mu=mu_o=0, lv=lv_o=0).
            flat = jnp.pad(flat, (0, _round_up(nelem, 128) - nelem))
        return flat.reshape(-1, 128)              # free reshape when aligned

    slabs = [to_rows(a) for a in (mu_new, lv_new, mu_old, lv_old)]
    rows = slabs[0].shape[0]

    # --- tiling plan: big tiles amortize the ~0.35us/grid-step overhead -------
    def plan(num_cores):
        rpc = pl.cdiv(rows, num_cores)
        tr = min(_MAX_TILE_ROWS, _round_up(rpc, 8))
        if tr >= _STRIP_ROWS:
            tr = _round_up(tr, _STRIP_ROWS)
            sr = _STRIP_ROWS
        else:
            sr = tr
        return tr, sr, pl.cdiv(rpc, tr)

    nc = _NUM_CORES
    tile_rows, strip_rows, kt = plan(nc)
    if nc > 1 and kt * tile_rows >= rows:
        nc = 1                                    # slab too small to split
        tile_rows, strip_rows, kt = plan(nc)

    needs_mask = (nc * kt * tile_rows != rows)
    max_block = pl.cdiv(rows, tile_rows) - 1      # clamp => never a fully-OOB DMA

    def slab_map(cc, kk):
        return (jnp.minimum(cc * kt + kk, max_block), 0)

    slab_spec = pl.BlockSpec((tile_rows, 128), slab_map)

    kernel = functools.partial(
        _fused_kernel, reduction=reduction, ignore_index=_IGNORE_INDEX,
        kl_scale=kl_scale, kt=kt, tile_rows=tile_rows, strip_rows=strip_rows,
        valid_rows=rows, needs_mask=needs_mask)

    bytes_accessed = int(sum(s.size * s.dtype.itemsize for s in slabs)
                         + output.size * output.dtype.itemsize
                         + tgt2d.size * tgt2d.dtype.itemsize
                         + nc * 8 * 128 * 4)
    cost = pl.CostEstimate(flops=int(9 * nelem + 4 * n * c),
                           transcendentals=int(2 * nelem),
                           bytes_accessed=bytes_accessed)

    partials = pl.pallas_call(
        kernel,
        out_shape=jax.ShapeDtypeStruct((nc, 8, 128), jnp.float32),
        grid=(nc, kt),
        in_specs=[
            pl.BlockSpec((n, c), lambda cc, kk: (0, 0)),   # log-probs: fetched once
            pl.BlockSpec((n, 1), lambda cc, kk: (0, 0)),   # targets
            slab_spec, slab_spec, slab_spec, slab_spec,
        ],
        out_specs=pl.BlockSpec((1, 8, 128), lambda cc, kk: (cc, 0, 0)),
        scratch_shapes=[pltpu.VMEM((8, 128), jnp.float32)],
        compiler_params=pltpu.CompilerParams(
            dimension_semantics=("parallel", "arbitrary")),
        cost_estimate=cost,
    )(output, tgt2d, *slabs)

    # Single tiny XLA reduce of the lane-dense partials: loss = nll + KL/normalizer.
    return jnp.sum(partials)


# ----------------------------------- main -------------------------------------

if __name__ == "__main__":
    root = jax.random.PRNGKey(0)
    k_logits, k_tgt, k_params = jax.random.split(root, 3)

    N, C = 8, 32
    logits = jax.random.normal(k_logits, (N, C), dtype=jnp.float32)
    output = jax.nn.log_softmax(logits, axis=-1)        # nll_loss expects log-probs
    target = jax.random.randint(k_tgt, (N,), 0, C, dtype=jnp.int32)

    def ref_nll(reduction):
        picked = output[jnp.arange(N), target]
        return -jnp.mean(picked) if reduction == "mean" else -jnp.sum(picked)

    # ---- old_model is None branch --------------------------------------------
    loss_no_prior = vcl_loss(output, target, reduction="mean")
    jax.block_until_ready(loss_no_prior)
    assert jnp.allclose(loss_no_prior, ref_nll("mean"), rtol=1e-5, atol=1e-5)

    # ---- old_model present: aligned, ragged-row, and non-128-multiple slabs ---
    slab_shapes = [(16, 128),    # exact coverage, 2-way core split
                   (200, 128),   # multi-strip tiles + masked ragged tail
                   (1000,)]      # not a multiple of 128 -> pad fallback, 1 core
    for idx, shape in enumerate(slab_shapes):
        kp = jax.random.fold_in(k_params, idx)
        k1, k2, k3, k4 = jax.random.split(kp, 4)
        mu_new = 0.1 * jax.random.normal(k1, shape, dtype=jnp.float32)
        lv_new = -3.0 + 0.1 * jax.random.normal(k2, shape, dtype=jnp.float32)
        mu_old = 0.1 * jax.random.normal(k3, shape, dtype=jnp.float32)
        lv_old = -3.0 + 0.1 * jax.random.normal(k4, shape, dtype=jnp.float32)

        kl_ref = 0.5 * jnp.sum(
            lv_old - lv_new
            + (jnp.exp(lv_new) + (mu_new - mu_old) ** 2) / jnp.exp(lv_old)
            - 1.0)

        for reduction in ("mean", "sum"):
            norm = N if reduction == "mean" else 1
            got = vcl_loss(output, target, (mu_new, lv_new), (mu_old, lv_old),
                           reduction=reduction)
            jax.block_until_ready(got)
            want = ref_nll(reduction) + kl_ref / norm
            assert jnp.allclose(got, want, rtol=1e-4, atol=1e-4), \
                (shape, reduction, float(got), float(want))

    print("KERNEL_OK")
</pallas_src>

<mosaic_0001>
module attributes {stable_mosaic.version = 11 : i64} {
  func.func @_nll_only_kernel(%arg0: memref<8x32xf32, #tpu.memory_space<vmem>>, %arg1: memref<8x1xi32, #tpu.memory_space<vmem>>, %arg2: memref<1xf32, #tpu.memory_space<smem>>) attributes {dimension_semantics = [], scalar_prefetch = 0 : i64, scratch_operands = 0 : i64, tpu.core_type = #tpu.core_type<tc>} {
    %c0 = arith.constant 0 : index
    %c0_0 = arith.constant 0 : index
    %0 = vector.load %arg0[%c0, %c0_0] : memref<8x32xf32, #tpu.memory_space<vmem>>, vector<8x32xf32>
    %c0_1 = arith.constant 0 : index
    %c0_2 = arith.constant 0 : index
    %1 = vector.load %arg1[%c0_1, %c0_2] : memref<8x1xi32, #tpu.memory_space<vmem>>, vector<8x1xi32>
    %2 = tpu.iota {dimensions = array<i32: 1>} : vector<8x32xi32>
    %c-100_i32 = arith.constant -100 : i32
    %3 = vector.broadcast %c-100_i32 : i32 to vector<8x1xi32>
    %4 = arith.cmpi ne, %1, %3 : vector<8x1xi32>
    %5 = vector.broadcast %1 : vector<8x1xi32> to vector<8x32xi32>
    %6 = arith.cmpi eq, %2, %5 : vector<8x32xi32>
    %7 = vector.broadcast %4 : vector<8x1xi1> to vector<8x32xi1>
    %8 = arith.andi %6, %7 : vector<8x32xi1>
    %cst = arith.constant 0.000000e+00 : f32
    %9 = vector.broadcast %cst : f32 to vector<8x32xf32>
    %10 = arith.select %8, %0, %9 : vector<8x32xi1>, vector<8x32xf32>
    %11 = vector.shape_cast %10 : vector<8x32xf32> to vector<1x8x32xf32>
    %cst_3 = arith.constant dense<0.000000e+00> : vector<1xf32>
    %12 = vector.multi_reduction <add>, %11, %cst_3 [1, 2] : vector<1x8x32xf32> to vector<1xf32>
    %13 = vector.shape_cast %12 : vector<1xf32> to vector<1x1x1xf32>
    %14 = vector.extract %13[0, 0, 0] : f32 from vector<1x1x1xf32>
    %15 = arith.extui %4 : vector<8x1xi1> to vector<8x1xi32>
    %16 = arith.sitofp %15 : vector<8x1xi32> to vector<8x1xf32>
    %17 = vector.shape_cast %16 : vector<8x1xf32> to vector<1x8x1xf32>
    %cst_4 = arith.constant dense<0.000000e+00> : vector<1xf32>
    %18 = vector.multi_reduction <add>, %17, %cst_4 [1, 2] : vector<1x8x1xf32> to vector<1xf32>
    %19 = vector.shape_cast %18 : vector<1xf32> to vector<1x1x1xf32>
    %20 = vector.extract %19[0, 0, 0] : f32 from vector<1x1x1xf32>
    %cst_5 = arith.constant 1.000000e+00 : f32
    %21 = arith.maximumf %20, %cst_5 : f32
    %cst_6 = arith.constant 0.000000e+00 : f32
    %22 = arith.subf %cst_6, %14 : f32
    %23 = arith.divf %22, %21 : f32
    %c0_7 = arith.constant 0 : index
    %24 = memref.load %arg2[%c0_7] : memref<1xf32, #tpu.memory_space<smem>>
    memref.store %23, %arg2[%c0_7] : memref<1xf32, #tpu.memory_space<smem>>
    return
  }
}

</mosaic_0001>

<llo_original>
// kernel: tpu_custom_call.1
$region0: #{tpu_custom_call.1}
  #allocation0 [shape = 'u32[]', space=smem, size = 0x4, offset = 0x4, fixed_abs, tag = 'smem constant byte address 0x4 - core index']
  #allocation1 [shape = 'u32[144,128]{1,0:T(1,128)}', space=vmem, size = 0x12000, scoped, tag = 'internal scratch']
  %s0 = inlined_call_operand.vmem [shape: f32[8,32], index: 0, kind: input, shape index: {}]
  %s1 = inlined_call_operand.vmem [shape: s32[8,1], index: 1, kind: input, shape index: {}]
  %s2 = inlined_call_operand.hbm [shape: f32[1], index: 2, kind: output, shape index: {}]
  %s3 = sld [smem:[#allocation0]]
  $region18: #{tpu_custom_call.1} parent=0
    _
  %s5 = ssub.s32 1, %s3
  %s6 = scalar_select 0, %s5, %s3
  $region1: #{tpu_custom_call.1} parent=0
    #allocation2 [shape = 'u8[512]{0}', space=smem, size = 0x200, scoped, tag = 'output window, operand 0, single buffered']
    #allocation3 [shape = 's32[1]{0}', space=sflag, size = 0x4, scoped, tag = 'scoped memory for tpu_custom_call.1']
    %7 = vsyncpa [#allocation3], 0
    // Predicated region
    $region2: #{tpu_custom_call.1} parent=1 // pred_check
      _
    $region3: #{tpu_custom_call.1} parent=1 // pred_check_branch
      %9 = sbr.rel (0) target = $region5
    $region4: #{tpu_custom_call.1} parent=1 // pred_region
      _
    $region5: #{tpu_custom_call.1} parent=1 // pred_fallthru
      _
    // Predicated region
    $region6: #{tpu_custom_call.1} parent=1 // pred_check
      _
    $region7: #{tpu_custom_call.1} parent=1 // pred_check_branch
      %11 = sbr.rel (0) target = $region9
    $region8: #{tpu_custom_call.1} parent=1 // pred_region
      _
    $region9: #{tpu_custom_call.1} parent=1 // pred_fallthru
      _
    %v12 = vld [vmem:[%s0] sm:$0xff]
    %v13 = vld [vmem:[%s1] sm:$0xff]
    %v14 = vlaneseq
    %v15 = vand.u32 %v14, 127
    %vm16 = vcmp.ne.s32.totalorder %v13, 4294967196
    %17 = vset.pattern.permute.xlu0 0
    %18 = vperm.xlu0 %17, %v13
    %v19 = vpop.permute.xlu0 %18
    %vm20 = vcmp.eq.s32.totalorder %v15, %v19
    %v21 = vsel %vm16, 1, 0
    %22 = vset.pattern.permute.xlu0 0
    %23 = vperm.xlu0 %22, %v21
    %v24 = vpop.permute.xlu0 %23
    %vm25 = vcmp.eq.s32.totalorder %v24, 1
    %vm26 = vmand %vm20, %vm25
    %v27 = vsel %vm26, %v12, 0.0
    %vm28 = vcmask 261120
    %v29 = vsel %vm28, %v27, 0.0
    %30 = vadd.xlane.f32.xlu0 %v29
    %v31 = vpop.xlane.xlu0 %30
    %v32 = vrot.slane %v31, 4
    %v33 = vadd.f32 %v31, %v32
    %v34 = vrot.slane %v33, 2
    %v35 = vadd.f32 %v33, %v34
    %v36 = vrot.slane %v35, 1
    %v37 = vadd.f32 %v35, %v36
    %s38 = vtos %v37
    %v39 = vcvt.s32.f32 %v21
    %vm40 = vcmask 7168
    %v41 = vsel %vm40, %v39, 0.0
    %42 = vadd.xlane.f32.xlu0 %v41
    %v43 = vpop.xlane.xlu0 %42
    %v44 = vrot.slane %v43, 4
    %v45 = vadd.f32 %v43, %v44
    %v46 = vrot.slane %v45, 2
    %v47 = vadd.f32 %v45, %v46
    %v48 = vrot.slane %v47, 1
    %v49 = vadd.f32 %v47, %v48
    %s50 = vtos %v49
    %s51 = smax.f32 %s50, 1.0
    %s52 = ssub.f32 0.0, %s38
    %v53 = vstv %s51
    %v54 = vrcp.pop %v53
    %s55 = vtos %v54
    %s56 = smul.f32 %s52, %s55
    %s57 = scalar_lea.smem [#allocation2], 0
    %58 = sst [smem:[%s57]] %s56
    // Predicated region
    $region10: #{tpu_custom_call.1} parent=1 // pred_check
      _
    $region11: #{tpu_custom_call.1} parent=1 // pred_check_branch
      %60 = sbr.rel (0) target = $region13
    $region12: #{tpu_custom_call.1} parent=1 // pred_region
      %s62 = ssub.s32 16, 16
      %63 = vsyncadd [#allocation3], %s62
      %66 = dma.smem_to_hbm [#allocation2], 16, %s2, [#allocation3]
    $region13: #{tpu_custom_call.1} parent=1 // pred_fallthru
      _
    // Predicated region
    $region14: #{tpu_custom_call.1} parent=1 // pred_check
      _
    $region15: #{tpu_custom_call.1} parent=1 // pred_check_branch
      %68 = sbr.rel (0) target = $region17
    $region16: #{tpu_custom_call.1} parent=1 // pred_region
      %69 = dma.done [#allocation3], 16
    $region17: #{tpu_custom_call.1} parent=1 // pred_fallthru
      _
    %70 = sfence
    %71 = vsyncpa [#allocation3], 1

</llo_original>
